<compile_context>
chip_gen: v7x
topology: tpu7x:2x2x1
jax: 0.10.0
libtpu: 0.0.40
codegen_flags: <defaults>
</compile_context>

<pallas_src>
import jax
import jax.numpy as jnp
from jax.experimental import pallas as pl
from jax.experimental.pallas import tpu as pltpu

_EPS = 1e-5  # nn.LayerNorm default


# ---------------------------------------------------------------------------
# Kernel: one grid step == layer-norm of one (C, T_TILE) slab of one batch row
# ---------------------------------------------------------------------------
def cnn_layernorm_kernel(x_ref, g_ref, b_ref, o_ref):
    # x_ref / o_ref: (C, T_TILE) in the input's native dtype.
    # g_ref / b_ref: (C, T_TILE) f32, resident across the whole grid.
    x = x_ref[...].astype(jnp.float32)
    inv_c = 1.0 / x.shape[0]
    mean = jnp.sum(x, axis=0, keepdims=True) * inv_c            # (1, T_TILE)
    ex2 = jnp.sum(x * x, axis=0, keepdims=True) * inv_c         # (1, T_TILE)
    var = jnp.maximum(ex2 - mean * mean, 0.0)                   # biased var
    inv = jax.lax.rsqrt(var + _EPS)                             # EUP slot
    y = (x - mean) * inv * g_ref[...] + b_ref[...]
    o_ref[...] = y.astype(o_ref.dtype)


# ---------------------------------------------------------------------------
# Tile selection: biggest lane-dense T tile that fits a conservative VMEM
# budget (sized for v7x's 64 MiB part / 32 MiB scoped default) with
# double-buffered x + y blocks and the resident f32 gamma/beta blocks.
# ---------------------------------------------------------------------------
def _choose_t_tile(C, T, itemsize, budget_bytes=16 * 1024 * 1024):
    # per-lane bytes: 2 bufs * (x + y) in native dtype  +  2 bufs * (g + b) f32
    bytes_per_lane = 4 * C * itemsize + 16 * C
    max_lanes = max(budget_bytes // bytes_per_lane, 128)
    t_tile = min(T, 2048, int(max_lanes))
    t_tile = max(128, (t_tile // 128) * 128)   # keep lane-dense (multiple of 128)
    return t_tile


# ---------------------------------------------------------------------------
# Wrapper
# ---------------------------------------------------------------------------
def cnn_layer_norm_pallas(x, gamma, beta, *, t_tile=None):
    """x: (B, C, T) f32/bf16; gamma/beta: (C,). Returns (B, C, T) in x.dtype."""
    B, C, T = x.shape
    assert gamma.shape == (C,) and beta.shape == (C,), "gamma/beta must be (n_feats,)"
    dtype = x.dtype

    if t_tile is None:
        t_tile = _choose_t_tile(C, T, jnp.dtype(dtype).itemsize)

    # Pad ragged T up to a multiple of t_tile so every output tile keeps the
    # unmasked full-width store path (per-column norm => padding is inert).
    T_pad = ((T + t_tile - 1) // t_tile) * t_tile
    if T_pad != T:
        x = jnp.pad(x, ((0, 0), (0, 0), (0, T_pad - T)))
    n_t = T_pad // t_tile

    # Pre-broadcast affine params to full lane width (f32 resident blocks).
    g2 = jnp.broadcast_to(gamma.astype(jnp.float32)[:, None], (C, t_tile))
    b2 = jnp.broadcast_to(beta.astype(jnp.float32)[:, None], (C, t_tile))

    grid_spec = pltpu.PrefetchScalarGridSpec(
        num_scalar_prefetch=0,
        grid=(B, n_t),
        in_specs=[
            pl.BlockSpec((pl.Squeezed(), C, t_tile), lambda b, t: (b, 0, t)),  # x
            pl.BlockSpec((C, t_tile), lambda b, t: (0, 0)),                    # gamma
            pl.BlockSpec((C, t_tile), lambda b, t: (0, 0)),                    # beta
        ],
        out_specs=pl.BlockSpec((pl.Squeezed(), C, t_tile), lambda b, t: (b, 0, t)),
    )

    y = pl.pallas_call(
        cnn_layernorm_kernel,
        grid_spec=grid_spec,
        out_shape=jax.ShapeDtypeStruct((B, C, T_pad), dtype),
        compiler_params=pltpu.CompilerParams(
            dimension_semantics=("parallel", "parallel")),
    )(x, g2, b2)

    if T_pad != T:
        y = y[:, :, :T]
    return y


# ---------------------------------------------------------------------------
# Pure-JAX reference (mirrors the PyTorch forward exactly)
# ---------------------------------------------------------------------------
def cnn_layer_norm_ref(x, gamma, beta, eps=_EPS):
    xt = jnp.swapaxes(x.astype(jnp.float32), 1, 2)   # (B, T, C)
    mean = jnp.mean(xt, axis=-1, keepdims=True)
    var = jnp.mean((xt - mean) ** 2, axis=-1, keepdims=True)
    y = (xt - mean) / jnp.sqrt(var + eps) * gamma + beta
    return jnp.swapaxes(y, 1, 2)                     # (B, C, T) f32


if __name__ == "__main__":
    # Small shapes consistent with the module: (batch, n_feats, time).
    # T deliberately NOT a multiple of 128 and t_tile forced small so the
    # demo exercises both the T-tiling grid axis and the pad/slice path.
    B, C, T = 2, 64, 700
    T_TILE = 256

    key = jax.random.PRNGKey(0)
    kx, kg, kb = jax.random.split(key, 3)
    x = jax.random.normal(kx, (B, C, T), jnp.float32) * 2.0 + 0.5
    gamma = 1.0 + 0.1 * jax.random.normal(kg, (C,), jnp.float32)
    beta = 0.1 * jax.random.normal(kb, (C,), jnp.float32)

    # f32 path: exact comparison against the reference.
    y = cnn_layer_norm_pallas(x, gamma, beta, t_tile=T_TILE)
    jax.block_until_ready(y)
    y_ref = cnn_layer_norm_ref(x, gamma, beta)
    assert y.shape == (B, C, T) and y.dtype == jnp.float32
    assert bool(jnp.all(jnp.isfinite(y)))
    assert jnp.allclose(y, y_ref, atol=1e-4, rtol=1e-4)

    # bf16 path: native-dtype DMA (no wrapper upcast), bf16 writeback.
    xb = x.astype(jnp.bfloat16)
    yb = cnn_layer_norm_pallas(xb, gamma, beta, t_tile=T_TILE)
    jax.block_until_ready(yb)
    assert yb.shape == (B, C, T) and yb.dtype == jnp.bfloat16
    assert bool(jnp.all(jnp.isfinite(yb.astype(jnp.float32))))

    print("KERNEL_OK")
</pallas_src>

<mosaic_0001>
module attributes {stable_mosaic.version = 11 : i64} {
  func.func @cnn_layernorm_kernel(%arg0: i32, %arg1: i32, %arg2: memref<1x64x256xf32, #tpu.memory_space<vmem>>, %arg3: memref<64x256xf32, #tpu.memory_space<vmem>>, %arg4: memref<64x256xf32, #tpu.memory_space<vmem>>, %arg5: memref<1x64x256xf32, #tpu.memory_space<vmem>>) attributes {dimension_semantics = [#tpu.dimension_semantics<parallel>, #tpu.dimension_semantics<parallel>], iteration_bounds = array<i64: 2, 3>, scalar_prefetch = 0 : i64, scratch_operands = 0 : i64, tpu.core_type = #tpu.core_type<tc>, window_params = [{transform_indices = @transform_0, window_bounds = array<i64: 1, 64, 256>}, {pipeline_mode = #tpu.pipeline_mode<synchronous>, transform_indices = @transform_1, window_bounds = array<i64: 64, 256>}, {pipeline_mode = #tpu.pipeline_mode<synchronous>, transform_indices = @transform_2, window_bounds = array<i64: 64, 256>}, {transform_indices = @transform_3, window_bounds = array<i64: 1, 64, 256>}]} {
    %c0 = arith.constant 0 : index
    %c0_0 = arith.constant 0 : index
    %c0_1 = arith.constant 0 : index
    %0 = vector.load %arg2[%c0, %c0_0, %c0_1] : memref<1x64x256xf32, #tpu.memory_space<vmem>>, vector<1x64x256xf32>
    %1 = vector.shape_cast %0 : vector<1x64x256xf32> to vector<64x256xf32>
    %cst = arith.constant dense<0.000000e+00> : vector<256xf32>
    %2 = vector.multi_reduction <add>, %1, %cst [0] : vector<64x256xf32> to vector<256xf32>
    %3 = vector.shape_cast %2 : vector<256xf32> to vector<1x256xf32>
    %cst_2 = arith.constant 1.562500e-02 : f32
    %4 = vector.broadcast %cst_2 : f32 to vector<1x256xf32>
    %5 = arith.mulf %3, %4 : vector<1x256xf32>
    %6 = arith.mulf %1, %1 : vector<64x256xf32>
    %cst_3 = arith.constant dense<0.000000e+00> : vector<256xf32>
    %7 = vector.multi_reduction <add>, %6, %cst_3 [0] : vector<64x256xf32> to vector<256xf32>
    %8 = vector.shape_cast %7 : vector<256xf32> to vector<1x256xf32>
    %cst_4 = arith.constant 1.562500e-02 : f32
    %9 = vector.broadcast %cst_4 : f32 to vector<1x256xf32>
    %10 = arith.mulf %8, %9 : vector<1x256xf32>
    %11 = arith.mulf %5, %5 : vector<1x256xf32>
    %12 = arith.subf %10, %11 : vector<1x256xf32>
    %cst_5 = arith.constant 0.000000e+00 : f32
    %13 = vector.broadcast %cst_5 : f32 to vector<1x256xf32>
    %14 = arith.maximumf %12, %13 : vector<1x256xf32>
    %cst_6 = arith.constant 9.99999974E-6 : f32
    %15 = vector.broadcast %cst_6 : f32 to vector<1x256xf32>
    %16 = arith.addf %14, %15 : vector<1x256xf32>
    %17 = math.rsqrt %16 : vector<1x256xf32>
    %18 = vector.broadcast %5 : vector<1x256xf32> to vector<64x256xf32>
    %19 = arith.subf %1, %18 : vector<64x256xf32>
    %20 = vector.broadcast %17 : vector<1x256xf32> to vector<64x256xf32>
    %21 = arith.mulf %19, %20 : vector<64x256xf32>
    %c0_7 = arith.constant 0 : index
    %c0_8 = arith.constant 0 : index
    %22 = vector.load %arg3[%c0_7, %c0_8] : memref<64x256xf32, #tpu.memory_space<vmem>>, vector<64x256xf32>
    %23 = arith.mulf %21, %22 : vector<64x256xf32>
    %c0_9 = arith.constant 0 : index
    %c0_10 = arith.constant 0 : index
    %24 = vector.load %arg4[%c0_9, %c0_10] : memref<64x256xf32, #tpu.memory_space<vmem>>, vector<64x256xf32>
    %25 = arith.addf %23, %24 : vector<64x256xf32>
    %c0_11 = arith.constant 0 : index
    %c0_12 = arith.constant 0 : index
    %c0_13 = arith.constant 0 : index
    %26 = vector.load %arg5[%c0_11, %c0_12, %c0_13] : memref<1x64x256xf32, #tpu.memory_space<vmem>>, vector<1x64x256xf32>
    %27 = vector.shape_cast %26 : vector<1x64x256xf32> to vector<64x256xf32>
    %28 = vector.shape_cast %25 : vector<64x256xf32> to vector<1x64x256xf32>
    tpu.vector_store %arg5[%c0_11, %c0_12, %c0_13], %28 {strides = array<i32>} : memref<1x64x256xf32, #tpu.memory_space<vmem>>, vector<1x64x256xf32>,
    return
  }
  func.func @transform_0(%arg0: i32, %arg1: i32) -> (i32, i32, i32) {
    %c0_i32 = arith.constant 0 : i32
    %c0_i32_0 = arith.constant 0 : i32
    return %arg0, %c0_i32, %arg1 : i32, i32, i32
  }
  func.func @transform_1(%arg0: i32, %arg1: i32) -> (i32, i32) {
    %c0_i32 = arith.constant 0 : i32
    %c0_i32_0 = arith.constant 0 : i32
    %c0_i32_1 = arith.constant 0 : i32
    return %c0_i32, %c0_i32_0 : i32, i32
  }
  func.func @transform_2(%arg0: i32, %arg1: i32) -> (i32, i32) {
    %c0_i32 = arith.constant 0 : i32
    %c0_i32_0 = arith.constant 0 : i32
    %c0_i32_1 = arith.constant 0 : i32
    return %c0_i32, %c0_i32_0 : i32, i32
  }
  func.func @transform_3(%arg0: i32, %arg1: i32) -> (i32, i32, i32) {
    %c0_i32 = arith.constant 0 : i32
    %c0_i32_0 = arith.constant 0 : i32
    return %arg0, %c0_i32, %arg1 : i32, i32, i32
  }
}

</mosaic_0001>

<llo_original>
// kernel: tpu_custom_call.1
$region0: #{tpu_custom_call.1}
  #allocation0 [shape = 'u32[]', space=smem, size = 0x4, offset = 0x4, fixed_abs, tag = 'smem constant byte address 0x4 - core index']
  #allocation1 [shape = 'u32[144,128]{1,0:T(1,128)}', space=vmem, size = 0x12000, scoped, tag = 'internal scratch']
  %s0 = inlined_call_operand.hbm [shape: f32[2,64,768], index: 0, kind: input, shape index: {}]
  %s1 = inlined_call_operand.hbm [shape: f32[64,256], index: 1, kind: input, shape index: {}]
  %s2 = inlined_call_operand.hbm [shape: f32[64,256], index: 2, kind: input, shape index: {}]
  %s3 = inlined_call_operand.hbm [shape: f32[2,64,768], index: 3, kind: output, shape index: {}]
  %s4 = sld [smem:[#allocation0]]
  $region57: #{tpu_custom_call.1} parent=0
    _
  %s6 = ssub.s32 1, %s4
  %s7 = scalar_select 0, %s6, %s4
  $region1: #{tpu_custom_call.1} parent=0
    #allocation2 [shape = 'u8[131072]{0}', space=vmem, size = 0x20000, scoped, tag = 'input window, operand 0']
    #allocation3 [shape = 's32[2]{0}', space=sflag, size = 0x8, scoped, tag = 'scoped memory for tpu_custom_call.1']
    #allocation4 [shape = 's32[2]{0}', space=sflag, size = 0x8, scoped, tag = 'scoped memory for tpu_custom_call.1']
    #allocation5 [shape = 'u8[65536]{0}', space=vmem, size = 0x10000, scoped, tag = 'input window, operand 1, single buffered']
    #allocation6 [shape = 's32[1]{0}', space=sflag, size = 0x4, scoped, tag = 'scoped memory for tpu_custom_call.1']
    #allocation7 [shape = 'u8[65536]{0}', space=vmem, size = 0x10000, scoped, tag = 'input window, operand 2, single buffered']
    #allocation8 [shape = 'u8[131072]{0}', space=vmem, size = 0x20000, scoped, tag = 'output window, operand 0']
    %8 = vsyncpa [#allocation3], 0
    %s9 = scalar_lea.sflag [#allocation3], 1
    %10 = vsyncpa %s9, 0
    %11 = vsyncpa [#allocation6], 0
    %12 = vsyncpa [#allocation4], 0
    %s13 = scalar_lea.sflag [#allocation4], 1
    %14 = vsyncpa %s13, 0
    loop: start=0, step=1, limit=8
    $region2: #{tpu_custom_call.1} parent=1 // loop_pre_header
      _
    $region3: #{tpu_custom_call.1} parent=1 // loop_header
      %s16 = sphi 0, %s20
      %p17 = scmp.ge.s32.totalorder %s16, 8
      %s23 = sphi 0, %s35
      %s24 = sphi 0, %s31
      %s25 = sphi 0, %s23
      %s26 = sphi 0, %s24
      %s27 = sphi 0, %s25
      %s28 = sphi 0, %s26
      %s40 = sphi 0, %s42
      %s43 = sphi 0, %s40
      %s44 = sphi 0, %s43
      %s60 = sphi 0, %s44
      %s64 = sphi 0, %s64
      %s66 = sphi 0, %s64
      %s67 = sphi 0, %s66
      %s81 = sphi 0, %s67
      %s85 = sphi 0, %s85
      %s87 = sphi 0, %s85
      %s88 = sphi 0, %s87
      %s102 = sphi 0, %s88
      %s110 = sphi 0, %s112
      %s113 = sphi 0, %s110
      %s114 = sphi 0, %s113
      %s130 = sphi 0, %s114
    $region4: #{tpu_custom_call.1} parent=1 // loop_header_branch
      %19 = sbr.rel (%p17) target = $region8
    $region5: #{tpu_custom_call.1} parent=1 // loop_body
      %s21 = ssub.s32 %s16, 1
      %s22 = ssub.s32 %s16, 2
      %s29 = sadd.s32 1, %s24
      %p30 = scmp.ge.s32.totalorder %s29, 3
      %s31 = scalar_select %p30, 0, %s29
      %s32 = sadd.s32 1, %s23
      %s33 = scalar_select %p30, %s32, %s23
      %p34 = scmp.ge.s32.totalorder %s33, 2
      %s35 = scalar_select %p34, 0, %s33
      %s36 = ssub.s32 %s23, %s35
      %s37 = ssub.s32 %s24, %s31
      %s38 = sor.u32 %s36, %s37
      %p39 = scmp.eq.s32.totalorder %s38, 0
      %s41 = sadd.s32 %s40, 1
      %s42 = scalar_select %p39, %s40, %s41
      %p45 = pneg %p39
      %p46 = scmp.eq.s32.totalorder %s16, 5
      %p47 = por %p45, %p46
      %p48 = scmp.ne.s32.totalorder %s40, %s43
      %p49 = scmp.eq.s32.totalorder %s16, 0
      %p50 = por %p48, %p49
      %p51 = scmp.ne.s32.totalorder %s40, %s43
      %p52 = scmp.eq.s32.totalorder %s21, 5
      %p53 = por %p51, %p52
      %p54 = scmp.ne.s32.totalorder %s43, %s44
      %p55 = scmp.eq.s32.totalorder %s21, 0
      %p56 = por %p54, %p55
      %p57 = scmp.ne.s32.totalorder %s43, %s44
      %p58 = scmp.eq.s32.totalorder %s22, 5
      %p59 = por %p57, %p58
      %p61 = scmp.ne.s32.totalorder %s44, %s60
      %p62 = scmp.eq.s32.totalorder %s22, 0
      %p63 = por %p61, %p62
      %s65 = sadd.s32 %s64, 1
      %p68 = scmp.eq.s32.totalorder %s16, 5
      %p69 = scmp.ne.s32.totalorder %s64, %s66
      %p70 = scmp.eq.s32.totalorder %s16, 0
      %p71 = por %p69, %p70
      %p72 = scmp.ne.s32.totalorder %s64, %s66
      %p73 = scmp.eq.s32.totalorder %s21, 5
      %p74 = por %p72, %p73
      %p75 = scmp.ne.s32.totalorder %s66, %s67
      %p76 = scmp.eq.s32.totalorder %s21, 0
      %p77 = por %p75, %p76
      %p78 = scmp.ne.s32.totalorder %s66, %s67
      %p79 = scmp.eq.s32.totalorder %s22, 5
      %p80 = por %p78, %p79
      %p82 = scmp.ne.s32.totalorder %s67, %s81
      %p83 = scmp.eq.s32.totalorder %s22, 0
      %p84 = por %p82, %p83
      %s86 = sadd.s32 %s85, 1
      %p89 = scmp.eq.s32.totalorder %s16, 5
      %p90 = scmp.ne.s32.totalorder %s85, %s87
      %p91 = scmp.eq.s32.totalorder %s16, 0
      %p92 = por %p90, %p91
      %p93 = scmp.ne.s32.totalorder %s85, %s87
      %p94 = scmp.eq.s32.totalorder %s21, 5
      %p95 = por %p93, %p94
      %p96 = scmp.ne.s32.totalorder %s87, %s88
      %p97 = scmp.eq.s32.totalorder %s21, 0
      %p98 = por %p96, %p97
      %p99 = scmp.ne.s32.totalorder %s87, %s88
      %p100 = scmp.eq.s32.totalorder %s22, 5
      %p101 = por %p99, %p100
      %p103 = scmp.ne.s32.totalorder %s88, %s102
      %p104 = scmp.eq.s32.totalorder %s22, 0
      %p105 = por %p103, %p104
      %s106 = ssub.s32 %s23, %s35
      %s107 = ssub.s32 %s24, %s31
      %s108 = sor.u32 %s106, %s107
      %p109 = scmp.eq.s32.totalorder %s108, 0
      %s111 = sadd.s32 %s110, 1
      %s112 = scalar_select %p109, %s110, %s111
      %p115 = pneg %p109
      %p116 = scmp.eq.s32.totalorder %s16, 5
      %p117 = por %p115, %p116
      %p118 = scmp.ne.s32.totalorder %s110, %s113
      %p119 = scmp.eq.s32.totalorder %s16, 0
      %p120 = por %p118, %p119
      %p121 = scmp.ne.s32.totalorder %s110, %s113
      %p122 = scmp.eq.s32.totalorder %s21, 5
      %p123 = por %p121, %p122
      %p124 = scmp.ne.s32.totalorder %s113, %s114
      %p125 = scmp.eq.s32.totalorder %s21, 0
      %p126 = por %p124, %p125
      %p127 = scmp.ne.s32.totalorder %s113, %s114
      %p128 = scmp.eq.s32.totalorder %s22, 5
      %p129 = por %p127, %p128
      %p131 = scmp.ne.s32.totalorder %s114, %s130
      %p132 = scmp.eq.s32.totalorder %s22, 0
      %p133 = por %p131, %p132
      %p134 = scmp.le.s32.totalorder 1, %s16
      %p135 = scmp.lt.s32.totalorder %s16, 7
      %p136 = pnand %p134, %p135
      %p137 = pneg %p136
      // Predicated region
      $region9: #{tpu_custom_call.1} parent=5 // pred_check
        _
      $region10: #{tpu_custom_call.1} parent=5 // pred_check_branch
        %139 = sbr.rel (%p136) target = $region12
      $region11: #{tpu_custom_call.1} parent=5 // pred_region
        %s140 = ssub.s32 %s16, 1
        // Predicated region
        $region13: #{tpu_custom_call.1} parent=11 // pred_check
          %p141 = pneg %p77
        $region14: #{tpu_custom_call.1} parent=11 // pred_check_branch
          %143 = sbr.rel (%p141) target = $region16
        $region15: #{tpu_custom_call.1} parent=11 // pred_region
          %s145 = ssub.s32 2048, 2048
          %146 = vsyncadd [#allocation6], %s145
          %s147 = sshll.u32 [#allocation5], 4
          %s148 = int_to_ptr.vmem [resolvable:$true] %s147
          %153 = dma.hbm_to_vmem [thread:$0]  %s1, 2048, %s148, [#allocation6], 256, 256, 16
        $region16: #{tpu_custom_call.1} parent=11 // pred_fallthru
          _
        // Predicated region
        $region17: #{tpu_custom_call.1} parent=11 // pred_check
          %p154 = pneg %p98
        $region18: #{tpu_custom_call.1} parent=11 // pred_check_branch
          %156 = sbr.rel (%p154) target = $region20
        $region19: #{tpu_custom_call.1} parent=11 // pred_region
          %s158 = ssub.s32 2048, 2048
          %159 = vsyncadd [#allocation6], %s158
          %s160 = sshll.u32 [#allocation7], 4
          %s161 = int_to_ptr.vmem [resolvable:$true] %s160
          %166 = dma.hbm_to_vmem [thread:$0]  %s2, 2048, %s161, [#allocation6], 256, 256, 16
        $region20: #{tpu_custom_call.1} parent=11 // pred_fallthru
          _
      $region12: #{tpu_custom_call.1} parent=5 // pred_fallthru
        _
      %p167 = scmp.lt.s32.totalorder %s16, 6
      // Predicated region
      $region21: #{tpu_custom_call.1} parent=5 // pred_check
        %p168 = pneg %p167
      $region22: #{tpu_custom_call.1} parent=5 // pred_check_branch
        %170 = sbr.rel (%p168) target = $region24
      $region23: #{tpu_custom_call.1} parent=5 // pred_region
        // Predicated region
        $region25: #{tpu_custom_call.1} parent=23 // pred_check
          %p171 = pneg %p50
        $region26: #{tpu_custom_call.1} parent=23 // pred_check_branch
          %173 = sbr.rel (%p171) target = $region28
        $region27: #{tpu_custom_call.1} parent=23 // pred_region
          %s174 = sand.u32 %s40, 1
          %s175 = scalar_lea.sflag [#allocation3], %s174
          %s176 = sand.u32 %s40, 1
          %s177 = smul.addr %s176, 128
          %s178 = scalar_lea.vmem [#allocation2], %s177
          %s179 = smul.u32 2, %s24
          %s181 = ssub.s32 2048, 2048
          %182 = vsyncadd %s175, %s181
          %s183 = smul.addr %s23, 48
          %s184 = sadd.s32 %s179, %s183
          %s185 = smul.addr %s184, 128
          %s186 = scalar_lea.hbm %s0, %s185
          %s187 = sshll.u32 %s178, 4
          %s188 = int_to_ptr.vmem [resolvable:$true] %s187
          %193 = dma.hbm_to_vmem [thread:$0]  %s186, 2048, %s188, %s175, 768, 256, 16
        $region28: #{tpu_custom_call.1} parent=23 // pred_fallthru
          _
      $region24: #{tpu_custom_call.1} parent=5 // pred_fallthru
        _
      %p194 = scmp.le.s32.totalorder 1, %s16
      %p195 = scmp.lt.s32.totalorder %s16, 7
      %p196 = pnand %p194, %p195
      %p197 = pneg %p196
      // Predicated region
      $region29: #{tpu_custom_call.1} parent=5 // pred_check
        _
      $region30: #{tpu_custom_call.1} parent=5 // pred_check_branch
        %199 = sbr.rel (%p196) target = $region32
      $region31: #{tpu_custom_call.1} parent=5 // pred_region
        %s200 = ssub.s32 %s16, 1
        %s201 = sand.u32 %s43, 1
        %s202 = scalar_lea.sflag [#allocation3], %s201
        %s203 = sand.u32 %s43, 1
        %s204 = smul.addr %s203, 128
        %s205 = scalar_lea.vmem [#allocation2], %s204
        // Predicated region
        $region33: #{tpu_custom_call.1} parent=31 // pred_check
          %p206 = pneg %p56
        $region34: #{tpu_custom_call.1} parent=31 // pred_check_branch
          %208 = sbr.rel (%p206) target = $region36
        $region35: #{tpu_custom_call.1} parent=31 // pred_region
          %209 = dma.done %s202, 2048
        $region36: #{tpu_custom_call.1} parent=31 // pred_fallthru
          _
        // Predicated region
        $region37: #{tpu_custom_call.1} parent=31 // pred_check
          %p210 = pneg %p77
        $region38: #{tpu_custom_call.1} parent=31 // pred_check_branch
          %212 = sbr.rel (%p210) target = $region40
        $region39: #{tpu_custom_call.1} parent=31 // pred_region
          %213 = dma.done [#allocation6], 2048
        $region40: #{tpu_custom_call.1} parent=31 // pred_fallthru
          _
        // Predicated region
        $region41: #{tpu_custom_call.1} parent=31 // pred_check
          %p214 = pneg %p98
        $region42: #{tpu_custom_call.1} parent=31 // pred_check_branch
          %216 = sbr.rel (%p214) target = $region44
        $region43: #{tpu_custom_call.1} parent=31 // pred_region
          %217 = dma.done [#allocation6], 2048
        $region44: #{tpu_custom_call.1} parent=31 // pred_fallthru
          _
        %s218 = sand.u32 %s43, 1
        %s219 = scalar_lea.sflag [#allocation3], %s218
        %s220 = sand.u32 %s43, 1
        %s221 = smul.addr %s220, 128
        %s222 = scalar_lea.vmem [#allocation2], %s221
        %p223 = pneg %p56
        %p224 = pneg %p53
        %p225 = pneg %p77
        %p226 = pneg %p74
        %p227 = pneg %p98
        %p228 = pneg %p95
        %p229 = pneg %p126
        %p230 = pneg %p123
        %s231 = sand.u32 %s113, 1
        %s232 = scalar_lea.sflag [#allocation4], %s231
        %s233 = sand.u32 %s113, 1
        %s234 = smul.addr %s233, 128
        %s235 = scalar_lea.vmem [#allocation8], %s234
        %s236 = smul.u32 2, %s26
        %s237 = smul.u32 2, %s26
        %v238 = vld [vmem:[%s205] sm:$0xff]
        %v239 = vld [vmem:[%s205 + $0x8] sm:$0xff]
        %v240 = vld [vmem:[%s205 + $0x10] sm:$0xff]
        %v241 = vld [vmem:[%s205 + $0x18] sm:$0xff]
        %v242 = vld [vmem:[%s205 + $0x20] sm:$0xff]
        %v243 = vld [vmem:[%s205 + $0x28] sm:$0xff]
        %v244 = vld [vmem:[%s205 + $0x30] sm:$0xff]
        %v245 = vld [vmem:[%s205 + $0x38] sm:$0xff]
        %v246 = vld [vmem:[%s205 + $0x40] sm:$0xff]
        %v247 = vld [vmem:[%s205 + $0x48] sm:$0xff]
        %v248 = vld [vmem:[%s205 + $0x50] sm:$0xff]
        %v249 = vld [vmem:[%s205 + $0x58] sm:$0xff]
        %v250 = vld [vmem:[%s205 + $0x60] sm:$0xff]
        %v251 = vld [vmem:[%s205 + $0x68] sm:$0xff]
        %v252 = vld [vmem:[%s205 + $0x70] sm:$0xff]
        %v253 = vld [vmem:[%s205 + $0x78] sm:$0xff]
        %v254 = vadd.f32 %v238, %v240
        %v255 = vadd.f32 %v254, %v242
        %v256 = vadd.f32 %v255, %v244
        %v257 = vadd.f32 %v256, %v246
        %v258 = vadd.f32 %v257, %v248
        %v259 = vadd.f32 %v258, %v250
        %v260 = vadd.f32 %v259, %v252
        %v261 = vrot.slane %v260, 4
        %v262 = vadd.f32 %v260, %v261
        %v263 = vrot.slane %v262, 2
        %v264 = vadd.f32 %v262, %v263
        %v265 = vrot.slane %v264, 1
        %v266 = vadd.f32 %v264, %v265
        %v267 = vadd.f32 %v239, %v241
        %v268 = vadd.f32 %v267, %v243
        %v269 = vadd.f32 %v268, %v245
        %v270 = vadd.f32 %v269, %v247
        %v271 = vadd.f32 %v270, %v249
        %v272 = vadd.f32 %v271, %v251
        %v273 = vadd.f32 %v272, %v253
        %v274 = vrot.slane %v273, 4
        %v275 = vadd.f32 %v273, %v274
        %v276 = vrot.slane %v275, 2
        %v277 = vadd.f32 %v275, %v276
        %v278 = vrot.slane %v277, 1
        %v279 = vadd.f32 %v277, %v278
        %v280 = vmul.f32 %v266, 0.015625
        %v281 = vmul.f32 %v279, 0.015625
        %v282 = vmul.f32 %v238, %v238
        %v283 = vmul.f32 %v239, %v239
        %v284 = vmul.f32 %v240, %v240
        %v285 = vmul.f32 %v241, %v241
        %v286 = vmul.f32 %v242, %v242
        %v287 = vmul.f32 %v243, %v243
        %v288 = vmul.f32 %v244, %v244
        %v289 = vmul.f32 %v245, %v245
        %v290 = vmul.f32 %v246, %v246
        %v291 = vmul.f32 %v247, %v247
        %v292 = vmul.f32 %v248, %v248
        %v293 = vmul.f32 %v249, %v249
        %v294 = vmul.f32 %v250, %v250
        %v295 = vmul.f32 %v251, %v251
        %v296 = vmul.f32 %v252, %v252
        %v297 = vmul.f32 %v253, %v253
        %v298 = vadd.f32 %v282, %v284
        %v299 = vadd.f32 %v298, %v286
        %v300 = vadd.f32 %v299, %v288
        %v301 = vadd.f32 %v300, %v290
        %v302 = vadd.f32 %v301, %v292
        %v303 = vadd.f32 %v302, %v294
        %v304 = vadd.f32 %v303, %v296
        %v305 = vrot.slane %v304, 4
        %v306 = vadd.f32 %v304, %v305
        %v307 = vrot.slane %v306, 2
        %v308 = vadd.f32 %v306, %v307
        %v309 = vrot.slane %v308, 1
        %v310 = vadd.f32 %v308, %v309
        %v311 = vadd.f32 %v283, %v285
        %v312 = vadd.f32 %v311, %v287
        %v313 = vadd.f32 %v312, %v289
        %v314 = vadd.f32 %v313, %v291
        %v315 = vadd.f32 %v314, %v293
        %v316 = vadd.f32 %v315, %v295
        %v317 = vadd.f32 %v316, %v297
        %v318 = vrot.slane %v317, 4
        %v319 = vadd.f32 %v317, %v318
        %v320 = vrot.slane %v319, 2
        %v321 = vadd.f32 %v319, %v320
        %v322 = vrot.slane %v321, 1
        %v323 = vadd.f32 %v321, %v322
        %v324 = vmul.f32 %v310, 0.015625
        %v325 = vmul.f32 %v323, 0.015625
        %v326 = vmul.f32 %v280, %v280
        %v327 = vmul.f32 %v281, %v281
        %v328 = vsub.f32 %v324, %v326
        %v329 = vsub.f32 %v325, %v327
        %v330 = vmax.f32 %v328, 0.0
        %v331 = vmax.f32 %v329, 0.0
        %v332 = vadd.f32 %v330, 1e-05
        %v333 = vadd.f32 %v331, 1e-05
        %v334 = vrsqrt.pop %v332
        %v335 = vrsqrt.pop %v333
        %v336 = vsub.f32 %v238, %v280
        %v337 = vsub.f32 %v239, %v281
        %v338 = vsub.f32 %v240, %v280
        %v339 = vsub.f32 %v241, %v281
        %v340 = vsub.f32 %v242, %v280
        %v341 = vsub.f32 %v243, %v281
        %v342 = vsub.f32 %v244, %v280
        %v343 = vsub.f32 %v245, %v281
        %v344 = vsub.f32 %v246, %v280
        %v345 = vsub.f32 %v247, %v281
        %v346 = vsub.f32 %v248, %v280
        %v347 = vsub.f32 %v249, %v281
        %v348 = vsub.f32 %v250, %v280
        %v349 = vsub.f32 %v251, %v281
        %v350 = vsub.f32 %v252, %v280
        %v351 = vsub.f32 %v253, %v281
        %v352 = vmul.f32 %v336, %v334
        %v353 = vmul.f32 %v337, %v335
        %v354 = vmul.f32 %v338, %v334
        %v355 = vmul.f32 %v339, %v335
        %v356 = vmul.f32 %v340, %v334
        %v357 = vmul.f32 %v341, %v335
        %v358 = vmul.f32 %v342, %v334
        %v359 = vmul.f32 %v343, %v335
        %v360 = vmul.f32 %v344, %v334
        %v361 = vmul.f32 %v345, %v335
        %v362 = vmul.f32 %v346, %v334
        %v363 = vmul.f32 %v347, %v335
        %v364 = vmul.f32 %v348, %v334
        %v365 = vmul.f32 %v349, %v335
        %v366 = vmul.f32 %v350, %v334
        %v367 = vmul.f32 %v351, %v335
        %v368 = vld [vmem:[#allocation5] sm:$0xff]
        %v369 = vld [vmem:[#allocation5 + $0x8] sm:$0xff]
        %v370 = vld [vmem:[#allocation5 + $0x10] sm:$0xff]
        %v371 = vld [vmem:[#allocation5 + $0x18] sm:$0xff]
        %v372 = vld [vmem:[#allocation5 + $0x20] sm:$0xff]
        %v373 = vld [vmem:[#allocation5 + $0x28] sm:$0xff]
        %v374 = vld [vmem:[#allocation5 + $0x30] sm:$0xff]
        %v375 = vld [vmem:[#allocation5 + $0x38] sm:$0xff]
        %v376 = vld [vmem:[#allocation5 + $0x40] sm:$0xff]
        %v377 = vld [vmem:[#allocation5 + $0x48] sm:$0xff]
        %v378 = vld [vmem:[#allocation5 + $0x50] sm:$0xff]
        %v379 = vld [vmem:[#allocation5 + $0x58] sm:$0xff]
        %v380 = vld [vmem:[#allocation5 + $0x60] sm:$0xff]
        %v381 = vld [vmem:[#allocation5 + $0x68] sm:$0xff]
        %v382 = vld [vmem:[#allocation5 + $0x70] sm:$0xff]
        %v383 = vld [vmem:[#allocation5 + $0x78] sm:$0xff]
        %v384 = vmul.f32 %v352, %v368
        %v385 = vmul.f32 %v353, %v369
        %v386 = vmul.f32 %v354, %v370
        %v387 = vmul.f32 %v355, %v371
        %v388 = vmul.f32 %v356, %v372
        %v389 = vmul.f32 %v357, %v373
        %v390 = vmul.f32 %v358, %v374
        %v391 = vmul.f32 %v359, %v375
        %v392 = vmul.f32 %v360, %v376
        %v393 = vmul.f32 %v361, %v377
        %v394 = vmul.f32 %v362, %v378
        %v395 = vmul.f32 %v363, %v379
        %v396 = vmul.f32 %v364, %v380
        %v397 = vmul.f32 %v365, %v381
        %v398 = vmul.f32 %v366, %v382
        %v399 = vmul.f32 %v367, %v383
        %v400 = vld [vmem:[#allocation7] sm:$0xff]
        %v401 = vld [vmem:[#allocation7 + $0x8] sm:$0xff]
        %v402 = vld [vmem:[#allocation7 + $0x10] sm:$0xff]
        %v403 = vld [vmem:[#allocation7 + $0x18] sm:$0xff]
        %v404 = vld [vmem:[#allocation7 + $0x20] sm:$0xff]
        %v405 = vld [vmem:[#allocation7 + $0x28] sm:$0xff]
        %v406 = vld [vmem:[#allocation7 + $0x30] sm:$0xff]
        %v407 = vld [vmem:[#allocation7 + $0x38] sm:$0xff]
        %v408 = vld [vmem:[#allocation7 + $0x40] sm:$0xff]
        %v409 = vld [vmem:[#allocation7 + $0x48] sm:$0xff]
        %v410 = vld [vmem:[#allocation7 + $0x50] sm:$0xff]
        %v411 = vld [vmem:[#allocation7 + $0x58] sm:$0xff]
        %v412 = vld [vmem:[#allocation7 + $0x60] sm:$0xff]
        %v413 = vld [vmem:[#allocation7 + $0x68] sm:$0xff]
        %v414 = vld [vmem:[#allocation7 + $0x70] sm:$0xff]
        %v415 = vld [vmem:[#allocation7 + $0x78] sm:$0xff]
        %v416 = vadd.f32 %v384, %v400
        %v417 = vadd.f32 %v385, %v401
        %v418 = vadd.f32 %v386, %v402
        %v419 = vadd.f32 %v387, %v403
        %v420 = vadd.f32 %v388, %v404
        %v421 = vadd.f32 %v389, %v405
        %v422 = vadd.f32 %v390, %v406
        %v423 = vadd.f32 %v391, %v407
        %v424 = vadd.f32 %v392, %v408
        %v425 = vadd.f32 %v393, %v409
        %v426 = vadd.f32 %v394, %v410
        %v427 = vadd.f32 %v395, %v411
        %v428 = vadd.f32 %v396, %v412
        %v429 = vadd.f32 %v397, %v413
        %v430 = vadd.f32 %v398, %v414
        %v431 = vadd.f32 %v399, %v415
        %432 = vst [vmem:[%s235] sm:$0xff] %v416
        %433 = vst [vmem:[%s235 + $0x8] sm:$0xff] %v417
        %434 = vst [vmem:[%s235 + $0x10] sm:$0xff] %v418
        %435 = vst [vmem:[%s235 + $0x18] sm:$0xff] %v419
        %436 = vst [vmem:[%s235 + $0x20] sm:$0xff] %v420
        %437 = vst [vmem:[%s235 + $0x28] sm:$0xff] %v421
        %438 = vst [vmem:[%s235 + $0x30] sm:$0xff] %v422
        %439 = vst [vmem:[%s235 + $0x38] sm:$0xff] %v423
        %440 = vst [vmem:[%s235 + $0x40] sm:$0xff] %v424
        %441 = vst [vmem:[%s235 + $0x48] sm:$0xff] %v425
        %442 = vst [vmem:[%s235 + $0x50] sm:$0xff] %v426
        %443 = vst [vmem:[%s235 + $0x58] sm:$0xff] %v427
        %444 = vst [vmem:[%s235 + $0x60] sm:$0xff] %v428
        %445 = vst [vmem:[%s235 + $0x68] sm:$0xff] %v429
        %446 = vst [vmem:[%s235 + $0x70] sm:$0xff] %v430
        %447 = vst [vmem:[%s235 + $0x78] sm:$0xff] %v431
        %s448 = sand.u32 %s113, 1
        %s449 = scalar_lea.sflag [#allocation4], %s448
        %s450 = sand.u32 %s113, 1
        %s451 = smul.addr %s450, 128
        %s452 = scalar_lea.vmem [#allocation8], %s451
        // Predicated region
        $region45: #{tpu_custom_call.1} parent=31 // pred_check
          %p453 = pneg %p123
        $region46: #{tpu_custom_call.1} parent=31 // pred_check_branch
          %455 = sbr.rel (%p453) target = $region48
        $region47: #{tpu_custom_call.1} parent=31 // pred_region
          %s456 = smul.u32 2, %s26
          %s458 = ssub.s32 2048, 2048
          %459 = vsyncadd %s449, %s458
          %s460 = smul.addr %s25, 48
          %s461 = sadd.s32 %s456, %s460
          %s462 = smul.addr %s461, 128
          %s463 = scalar_lea.hbm %s3, %s462
          %s464 = sshll.u32 %s452, 4
          %s465 = int_to_ptr.vmem [resolvable:$true] %s464
          %470 = dma.vmem_to_hbm [thread:$0]  %s465, 2048, %s463, %s449, 256, 768, 16
        $region48: #{tpu_custom_call.1} parent=31 // pred_fallthru
          _
      $region32: #{tpu_custom_call.1} parent=5 // pred_fallthru
        _
      %p471 = scmp.le.s32.totalorder 2, %s16
      // Predicated region
      $region49: #{tpu_custom_call.1} parent=5 // pred_check
        %p472 = pneg %p471
      $region50: #{tpu_custom_call.1} parent=5 // pred_check_branch
        %474 = sbr.rel (%p472) target = $region52
      $region51: #{tpu_custom_call.1} parent=5 // pred_region
        %s475 = ssub.s32 %s16, 2
        // Predicated region
        $region53: #{tpu_custom_call.1} parent=51 // pred_check
          %p476 = pneg %p129
        $region54: #{tpu_custom_call.1} parent=51 // pred_check_branch
          %478 = sbr.rel (%p476) target = $region56
        $region55: #{tpu_custom_call.1} parent=51 // pred_region
          %s479 = sand.u32 %s114, 1
          %s480 = scalar_lea.sflag [#allocation4], %s479
          %s481 = sand.u32 %s114, 1
          %s482 = smul.addr %s481, 128
          %s483 = scalar_lea.vmem [#allocation8], %s482
          %484 = dma.done %s480, 2048
        $region56: #{tpu_custom_call.1} parent=51 // pred_fallthru
          _
      $region52: #{tpu_custom_call.1} parent=5 // pred_fallthru
        _
    $region6: #{tpu_custom_call.1} parent=1 // loop_footer
      %s20 = sadd.s32 1, %s16
    $region7: #{tpu_custom_call.1} parent=1 // loop_footer_branch
      %15 = sbr.rel target = $region3
    $region8: #{tpu_custom_call.1} parent=1 // loop_exit
      _
    %485 = vsyncpa [#allocation3], 1
    %s486 = scalar_lea.sflag [#allocation3], 1
    %487 = vsyncpa %s486, 1
    %488 = vsyncpa [#allocation6], 1
    %489 = vsyncpa [#allocation4], 1
    %s490 = scalar_lea.sflag [#allocation4], 1
    %491 = vsyncpa %s490, 1

</llo_original>
